<compile_context>
chip_gen: v7x
topology: tpu7x:2x2x1
jax: 0.10.0
libtpu: 0.0.40
codegen_flags: <defaults>
</compile_context>

<pallas_src>
import functools
import math

import jax
import jax.numpy as jnp
from jax.experimental import pallas as pl
from jax.experimental.pallas import tpu as pltpu

_H1 = 64             # per-head hidden-1 width  (fused: 2 * 64 = 128)
_H2 = 32             # per-head hidden-2 width  (fused: 2 * 32 = 64, lane-padded to 128)
_FUSED_H1 = 2 * _H1  # 128
_FUSED_PAD = 128     # lane-dense padded width used for hidden-2 and the output


def _round_up(x, m):
    return (x + m - 1) // m * m


def _ppo_fused_kernel(x_ref, w1_ref, w2_ref, w3_ref, b_ref, out_ref, *, out_size):
    x = x_ref[...]                                                    # (bm, in) f32

    # fused layer 1: (bm, in) @ (in, 128) -> (bm, 128)
    h = jnp.dot(x, w1_ref[...], preferred_element_type=jnp.float32) + b_ref[0:1, :]
    h = jnp.maximum(h, 0.0)

    # fused layer 2 (block-diagonal, lane-padded): (bm, 128) @ (128, 128) -> (bm, 128)
    # lanes [64, 128) of the result are exact zeros (zero weights / zero bias).
    h = jnp.dot(h, w2_ref[...], preferred_element_type=jnp.float32) + b_ref[1:2, :]
    h = jnp.maximum(h, 0.0)

    # fused layer 3 (block-diagonal, lane-padded): (bm, 128) @ (128, 128) -> (bm, 128)
    # lanes [0, out_size)      = actor logits
    # lane  out_size           = critic value
    # lanes (out_size, 128)    = exact zeros (zero weights / zero bias)
    y = jnp.dot(h, w3_ref[...], preferred_element_type=jnp.float32) + b_ref[2:3, :]

    lane = jax.lax.broadcasted_iota(jnp.int32, y.shape, 1)
    is_logit = lane < out_size

    # masked softmax over the logical logit lanes only
    masked = jnp.where(is_logit, y, jnp.float32(-1e30))
    m = jnp.max(masked, axis=-1, keepdims=True)
    e = jnp.where(is_logit, jnp.exp(masked - m), 0.0)
    denom = jnp.sum(e, axis=-1, keepdims=True)
    probs = e * pl.reciprocal(denom, approx=False)   # exact: keeps 1e-5 tolerances

    # lane-dense packed output: [probs | value | zeros]
    out_ref[...] = jnp.where(is_logit, probs, jnp.where(lane == out_size, y, 0.0))


def pack_ppo_params(p):
    """Fuse per-head PyTorch-style params into 3 weight slabs + 1 bias slab."""
    in_size = p["aw1"].shape[0]
    out_size = p["aw3"].shape[1]
    assert out_size + 1 <= _FUSED_PAD

    w1 = jnp.concatenate([p["aw1"], p["cw1"]], axis=1)               # (in, 128)

    w2 = jnp.zeros((_FUSED_H1, _FUSED_PAD), jnp.float32)             # (128, 128)
    w2 = w2.at[:_H1, :_H2].set(p["aw2"]).at[_H1:, _H2:2 * _H2].set(p["cw2"])

    w3 = jnp.zeros((_FUSED_PAD, _FUSED_PAD), jnp.float32)            # (128, 128)
    w3 = w3.at[:_H2, :out_size].set(p["aw3"])
    w3 = w3.at[_H2:2 * _H2, out_size:out_size + 1].set(p["cw3"])

    # (8, 128) bias slab: row 0 = layer-1 bias, row 1 = layer-2 bias (lanes
    # 64:128 zero), row 2 = layer-3 bias ([actor b | critic b | zeros]).
    # Rows 3-7 are unused sublane padding to keep an (8,128)-aligned tile.
    b = jnp.zeros((8, _FUSED_PAD), jnp.float32)
    b = b.at[0, :_FUSED_H1].set(jnp.concatenate([p["ab1"], p["cb1"]], axis=1)[0])
    b = b.at[1, :2 * _H2].set(jnp.concatenate([p["ab2"], p["cb2"]], axis=1)[0])
    b = b.at[2, :out_size].set(p["ab3"][0])
    b = b.at[2, out_size].set(p["cb3"][0, 0])

    return dict(w1=w1, w2=w2, w3=w3, b=b, in_size=in_size, out_size=out_size)


def _choose_block_m(B):
    """Batch-tile size: big tiles to amortize per-step overhead, >=2 grid
    blocks for large batches so v7x's two TensorCores both get work."""
    if B <= 256:
        return _round_up(B, 8)                       # single grid block
    return min(1024, _round_up(pl.cdiv(B, 2), 8))    # >= 2 blocks, capped at 1024


def ppo_forward(x, packed):
    """x: (B, input_size) f32.  Returns (action_probs (B, out), value (B, 1))."""
    B, in_size = x.shape
    assert in_size == packed["in_size"]
    out_size = packed["out_size"]

    block_m = _choose_block_m(B)
    grid_m = pl.cdiv(B, block_m)
    padded_B = grid_m * block_m     # output rows; no wrapper-side pad of x

    kernel = functools.partial(_ppo_fused_kernel, out_size=out_size)

    out = pl.pallas_call(
        kernel,
        out_shape=jax.ShapeDtypeStruct((padded_B, _FUSED_PAD), jnp.float32),
        grid_spec=pltpu.PrefetchScalarGridSpec(
            num_scalar_prefetch=0,
            grid=(grid_m,),
            in_specs=[
                pl.BlockSpec((block_m, in_size), lambda i: (i, 0)),   # x: tiled on batch
                pl.BlockSpec(packed["w1"].shape, lambda i: (0, 0)),   # weights resident
                pl.BlockSpec(packed["w2"].shape, lambda i: (0, 0)),
                pl.BlockSpec(packed["w3"].shape, lambda i: (0, 0)),
                pl.BlockSpec(packed["b"].shape, lambda i: (0, 0)),
            ],
            out_specs=pl.BlockSpec((block_m, _FUSED_PAD), lambda i: (i, 0)),
        ),
        compiler_params=pltpu.CompilerParams(
            dimension_semantics=("parallel",),   # megacore: split batch blocks on v7x
        ),
    )(x, packed["w1"], packed["w2"], packed["w3"], packed["b"])

    probs = out[:B, :out_size]
    value = out[:B, out_size:out_size + 1]
    return probs, value


def _linear_params(key, fan_in, fan_out):
    # PyTorch nn.Linear default init: U(-1/sqrt(fan_in), 1/sqrt(fan_in)).
    kw, kb = jax.random.split(key)
    bound = 1.0 / math.sqrt(fan_in)
    w = jax.random.uniform(kw, (fan_in, fan_out), jnp.float32, -bound, bound)
    b = jax.random.uniform(kb, (1, fan_out), jnp.float32, -bound, bound)
    return w, b


def init_ppo_params(key, input_size, output_size):
    keys = jax.random.split(key, 6)
    aw1, ab1 = _linear_params(keys[0], input_size, _H1)
    aw2, ab2 = _linear_params(keys[1], _H1, _H2)
    aw3, ab3 = _linear_params(keys[2], _H2, output_size)
    cw1, cb1 = _linear_params(keys[3], input_size, _H1)
    cw2, cb2 = _linear_params(keys[4], _H1, _H2)
    cw3, cb3 = _linear_params(keys[5], _H2, 1)
    return dict(
        aw1=aw1, ab1=ab1, aw2=aw2, ab2=ab2, aw3=aw3, ab3=ab3,
        cw1=cw1, cb1=cb1, cw2=cw2, cb2=cb2, cw3=cw3, cb3=cb3,
    )


def _reference_forward(x, p):
    def relu(v):
        return jnp.maximum(v, 0.0)
    h = relu(x @ p["aw1"] + p["ab1"])
    h = relu(h @ p["aw2"] + p["ab2"])
    logits = h @ p["aw3"] + p["ab3"]
    probs = jax.nn.softmax(logits, axis=-1)
    g = relu(x @ p["cw1"] + p["cb1"])
    g = relu(g @ p["cw2"] + p["cb2"])
    value = g @ p["cw3"] + p["cb3"]
    return probs, value


if __name__ == "__main__":
    key = jax.random.PRNGKey(0)
    k_params, k_x1, k_x2 = jax.random.split(key, 3)

    input_size = 32   # snake-game state feature vector
    output_size = 4   # 4 actions
    batch = 8

    params = init_ppo_params(k_params, input_size, output_size)
    packed = pack_ppo_params(params)

    # small batch (single grid step)
    x = jax.random.normal(k_x1, (batch, input_size), dtype=jnp.float32)
    probs, value = ppo_forward(x, packed)
    jax.block_until_ready((probs, value))

    ref_probs, ref_value = _reference_forward(x, params)
    assert probs.shape == (batch, output_size)
    assert value.shape == (batch, 1)
    assert jnp.allclose(probs, ref_probs, atol=1e-5, rtol=1e-5)
    assert jnp.allclose(value, ref_value, atol=1e-5, rtol=1e-5)
    assert jnp.allclose(jnp.sum(probs, axis=-1), 1.0, atol=1e-5)

    # larger ragged batch: exercises the 2-block grid and the unpadded-input
    # tail-block path (B=300 -> block_m=152, grid=2, padded output rows=304)
    big_batch = 300
    xb = jax.random.normal(k_x2, (big_batch, input_size), dtype=jnp.float32)
    probs_b, value_b = ppo_forward(xb, packed)
    jax.block_until_ready((probs_b, value_b))
    ref_probs_b, ref_value_b = _reference_forward(xb, params)
    assert probs_b.shape == (big_batch, output_size)
    assert value_b.shape == (big_batch, 1)
    assert jnp.allclose(probs_b, ref_probs_b, atol=1e-5, rtol=1e-5)
    assert jnp.allclose(value_b, ref_value_b, atol=1e-5, rtol=1e-5)
    assert jnp.allclose(jnp.sum(probs_b, axis=-1), 1.0, atol=1e-5)

    print("KERNEL_OK")
</pallas_src>

<mosaic_0001>
module attributes {stable_mosaic.version = 11 : i64} {
  func.func @_ppo_fused_kernel(%arg0: i32, %arg1: memref<8x32xf32, #tpu.memory_space<vmem>>, %arg2: memref<32x128xf32, #tpu.memory_space<vmem>>, %arg3: memref<128x128xf32, #tpu.memory_space<vmem>>, %arg4: memref<128x128xf32, #tpu.memory_space<vmem>>, %arg5: memref<8x128xf32, #tpu.memory_space<vmem>>, %arg6: memref<8x128xf32, #tpu.memory_space<vmem>>) attributes {dimension_semantics = [#tpu.dimension_semantics<parallel>], iteration_bounds = array<i64: 1>, scalar_prefetch = 0 : i64, scratch_operands = 0 : i64, tpu.core_type = #tpu.core_type<tc>, window_params = [{transform_indices = @transform_0, window_bounds = array<i64: 8, 32>}, {pipeline_mode = #tpu.pipeline_mode<synchronous>, transform_indices = @transform_1, window_bounds = array<i64: 32, 128>}, {pipeline_mode = #tpu.pipeline_mode<synchronous>, transform_indices = @transform_2, window_bounds = array<i64: 128, 128>}, {pipeline_mode = #tpu.pipeline_mode<synchronous>, transform_indices = @transform_3, window_bounds = array<i64: 128, 128>}, {pipeline_mode = #tpu.pipeline_mode<synchronous>, transform_indices = @transform_4, window_bounds = array<i64: 8, 128>}, {transform_indices = @transform_5, window_bounds = array<i64: 8, 128>}]} {
    %c0 = arith.constant 0 : index
    %c0_0 = arith.constant 0 : index
    %0 = vector.load %arg1[%c0, %c0_0] : memref<8x32xf32, #tpu.memory_space<vmem>>, vector<8x32xf32>
    %c0_1 = arith.constant 0 : index
    %c0_2 = arith.constant 0 : index
    %1 = vector.load %arg2[%c0_1, %c0_2] : memref<32x128xf32, #tpu.memory_space<vmem>>, vector<32x128xf32>
    %cst = arith.constant dense<0.000000e+00> : vector<8x128xf32>
    %2 = tpu.matmul %0, %1, %cst {dimension_numbers = #tpu.dot_dimension_numbers<[1], [0], [0], [1], [0, 0, 1, 1], [], []>} : vector<8x32xf32>, vector<32x128xf32>, vector<8x128xf32> -> vector<8x128xf32>
    %c0_3 = arith.constant 0 : index
    %c0_4 = arith.constant 0 : index
    %3 = vector.load %arg5[%c0_3, %c0_4] : memref<8x128xf32, #tpu.memory_space<vmem>>, vector<1x128xf32>
    %4 = vector.broadcast %3 : vector<1x128xf32> to vector<8x128xf32>
    %5 = arith.addf %2, %4 : vector<8x128xf32>
    %cst_5 = arith.constant 0.000000e+00 : f32
    %6 = vector.broadcast %cst_5 : f32 to vector<8x128xf32>
    %7 = arith.maximumf %5, %6 : vector<8x128xf32>
    %c0_6 = arith.constant 0 : index
    %c0_7 = arith.constant 0 : index
    %8 = vector.load %arg3[%c0_6, %c0_7] : memref<128x128xf32, #tpu.memory_space<vmem>>, vector<128x128xf32>
    %cst_8 = arith.constant dense<0.000000e+00> : vector<8x128xf32>
    %9 = tpu.matmul %7, %8, %cst_8 {dimension_numbers = #tpu.dot_dimension_numbers<[1], [0], [0], [1], [0, 0, 1, 1], [], []>} : vector<8x128xf32>, vector<128x128xf32>, vector<8x128xf32> -> vector<8x128xf32>
    %c1 = arith.constant 1 : index
    %c0_9 = arith.constant 0 : index
    %10 = vector.load %arg5[%c1, %c0_9] : memref<8x128xf32, #tpu.memory_space<vmem>>, vector<1x128xf32>
    %11 = vector.broadcast %10 : vector<1x128xf32> to vector<8x128xf32>
    %12 = arith.addf %9, %11 : vector<8x128xf32>
    %cst_10 = arith.constant 0.000000e+00 : f32
    %13 = vector.broadcast %cst_10 : f32 to vector<8x128xf32>
    %14 = arith.maximumf %12, %13 : vector<8x128xf32>
    %c0_11 = arith.constant 0 : index
    %c0_12 = arith.constant 0 : index
    %15 = vector.load %arg4[%c0_11, %c0_12] : memref<128x128xf32, #tpu.memory_space<vmem>>, vector<128x128xf32>
    %cst_13 = arith.constant dense<0.000000e+00> : vector<8x128xf32>
    %16 = tpu.matmul %14, %15, %cst_13 {dimension_numbers = #tpu.dot_dimension_numbers<[1], [0], [0], [1], [0, 0, 1, 1], [], []>} : vector<8x128xf32>, vector<128x128xf32>, vector<8x128xf32> -> vector<8x128xf32>
    %c2 = arith.constant 2 : index
    %c0_14 = arith.constant 0 : index
    %17 = vector.load %arg5[%c2, %c0_14] : memref<8x128xf32, #tpu.memory_space<vmem>>, vector<1x128xf32>
    %18 = vector.broadcast %17 : vector<1x128xf32> to vector<8x128xf32>
    %19 = arith.addf %16, %18 : vector<8x128xf32>
    %20 = tpu.iota {dimensions = array<i32: 1>} : vector<8x128xi32>
    %c4_i32 = arith.constant 4 : i32
    %21 = vector.broadcast %c4_i32 : i32 to vector<8x128xi32>
    %22 = arith.cmpi slt, %20, %21 : vector<8x128xi32>
    %cst_15 = arith.constant -1.000000e+30 : f32
    %23 = vector.broadcast %cst_15 : f32 to vector<8x128xf32>
    %24 = arith.select %22, %19, %23 : vector<8x128xi1>, vector<8x128xf32>
    %cst_16 = arith.constant dense<0xFF800000> : vector<8xf32>
    %25 = vector.multi_reduction <maximumf>, %24, %cst_16 [1] : vector<8x128xf32> to vector<8xf32>
    %26 = vector.shape_cast %25 : vector<8xf32> to vector<8x1xf32>
    %27 = vector.broadcast %26 : vector<8x1xf32> to vector<8x128xf32>
    %28 = arith.subf %24, %27 : vector<8x128xf32>
    %29 = math.exp %28 : vector<8x128xf32>
    %cst_17 = arith.constant 0.000000e+00 : f32
    %30 = vector.broadcast %cst_17 : f32 to vector<8x128xf32>
    %31 = arith.select %22, %29, %30 : vector<8x128xi1>, vector<8x128xf32>
    %cst_18 = arith.constant dense<0.000000e+00> : vector<8xf32>
    %32 = vector.multi_reduction <add>, %31, %cst_18 [1] : vector<8x128xf32> to vector<8xf32>
    %33 = vector.shape_cast %32 : vector<8xf32> to vector<8x1xf32>
    %34 = tpu.reciprocal %33 : vector<8x1xf32> -> vector<8x1xf32>
    %35 = vector.broadcast %34 : vector<8x1xf32> to vector<8x128xf32>
    %36 = arith.mulf %31, %35 : vector<8x128xf32>
    %c4_i32_19 = arith.constant 4 : i32
    %37 = vector.broadcast %c4_i32_19 : i32 to vector<8x128xi32>
    %38 = arith.cmpi eq, %20, %37 : vector<8x128xi32>
    %cst_20 = arith.constant 0.000000e+00 : f32
    %39 = vector.broadcast %cst_20 : f32 to vector<8x128xf32>
    %40 = arith.select %38, %19, %39 : vector<8x128xi1>, vector<8x128xf32>
    %41 = arith.select %22, %36, %40 : vector<8x128xi1>, vector<8x128xf32>
    %c0_21 = arith.constant 0 : index
    %c0_22 = arith.constant 0 : index
    %42 = vector.load %arg6[%c0_21, %c0_22] : memref<8x128xf32, #tpu.memory_space<vmem>>, vector<8x128xf32>
    tpu.vector_store %arg6[%c0_21, %c0_22], %41 {strides = array<i32>} : memref<8x128xf32, #tpu.memory_space<vmem>>, vector<8x128xf32>,
    return
  }
  func.func @transform_0(%arg0: i32) -> (i32, i32) {
    %c0_i32 = arith.constant 0 : i32
    %c0_i32_0 = arith.constant 0 : i32
    return %arg0, %c0_i32 : i32, i32
  }
  func.func @transform_1(%arg0: i32) -> (i32, i32) {
    %c0_i32 = arith.constant 0 : i32
    %c0_i32_0 = arith.constant 0 : i32
    %c0_i32_1 = arith.constant 0 : i32
    return %c0_i32, %c0_i32_0 : i32, i32
  }
  func.func @transform_2(%arg0: i32) -> (i32, i32) {
    %c0_i32 = arith.constant 0 : i32
    %c0_i32_0 = arith.constant 0 : i32
    %c0_i32_1 = arith.constant 0 : i32
    return %c0_i32, %c0_i32_0 : i32, i32
  }
  func.func @transform_3(%arg0: i32) -> (i32, i32) {
    %c0_i32 = arith.constant 0 : i32
    %c0_i32_0 = arith.constant 0 : i32
    %c0_i32_1 = arith.constant 0 : i32
    return %c0_i32, %c0_i32_0 : i32, i32
  }
  func.func @transform_4(%arg0: i32) -> (i32, i32) {
    %c0_i32 = arith.constant 0 : i32
    %c0_i32_0 = arith.constant 0 : i32
    %c0_i32_1 = arith.constant 0 : i32
    return %c0_i32, %c0_i32_0 : i32, i32
  }
  func.func @transform_5(%arg0: i32) -> (i32, i32) {
    %c0_i32 = arith.constant 0 : i32
    %c0_i32_0 = arith.constant 0 : i32
    return %arg0, %c0_i32 : i32, i32
  }
}

</mosaic_0001>

<llo_original>
// kernel: tpu_custom_call.1
$region0: #{tpu_custom_call.1}
  #allocation0 [shape = 'u32[]', space=smem, size = 0x4, offset = 0x4, fixed_abs, tag = 'smem constant byte address 0x4 - core index']
  #allocation1 [shape = 'u32[144,128]{1,0:T(1,128)}', space=vmem, size = 0x12000, scoped, tag = 'internal scratch']
  %s0 = inlined_call_operand.hbm [shape: f32[8,32], index: 0, kind: input, shape index: {}]
  %s1 = inlined_call_operand.hbm [shape: f32[32,128], index: 1, kind: input, shape index: {}]
  %s2 = inlined_call_operand.hbm [shape: f32[128,128], index: 2, kind: input, shape index: {}]
  %s3 = inlined_call_operand.hbm [shape: f32[128,128], index: 3, kind: input, shape index: {}]
  %s4 = inlined_call_operand.vmem [shape: f32[8,128], index: 4, kind: input, shape index: {}]
  %s5 = inlined_call_operand.hbm [shape: f32[8,128], index: 5, kind: output, shape index: {}]
  %s6 = sld [smem:[#allocation0]]
  $region46: #{tpu_custom_call.1} parent=0
    _
  %s8 = ssub.s32 1, %s6
  %s9 = scalar_select 0, %s8, %s6
  $region1: #{tpu_custom_call.1} parent=0
    #allocation2 [shape = 'u8[4096]{0}', space=vmem, size = 0x1000, scoped, tag = 'input window, operand 0, single buffered']
    #allocation3 [shape = 's32[1]{0}', space=sflag, size = 0x4, scoped, tag = 'scoped memory for tpu_custom_call.1']
    #allocation4 [shape = 's32[1]{0}', space=sflag, size = 0x4, scoped, tag = 'scoped memory for tpu_custom_call.1']
    #allocation5 [shape = 'u8[16384]{0}', space=vmem, size = 0x4000, scoped, tag = 'input window, operand 1, single buffered']
    #allocation6 [shape = 's32[1]{0}', space=sflag, size = 0x4, scoped, tag = 'scoped memory for tpu_custom_call.1']
    #allocation7 [shape = 'u8[65536]{0}', space=vmem, size = 0x10000, scoped, tag = 'input window, operand 2, single buffered']
    #allocation8 [shape = 'u8[65536]{0}', space=vmem, size = 0x10000, scoped, tag = 'input window, operand 3, single buffered']
    #allocation9 [shape = 's32[1]{0}', space=sflag, size = 0x4, scoped, tag = 'scoped memory for tpu_custom_call.1']
    #allocation10 [shape = 'u8[4096]{0}', space=vmem, size = 0x1000, scoped, tag = 'output window, operand 0, single buffered']
    %10 = vsyncpa [#allocation3], 0
    %11 = vsyncpa [#allocation6], 0
    %12 = vsyncpa [#allocation9], 0
    %13 = vsyncpa [#allocation4], 0
    // Predicated region
    $region2: #{tpu_custom_call.1} parent=1 // pred_check
      _
    $region3: #{tpu_custom_call.1} parent=1 // pred_check_branch
      %15 = sbr.rel (0) target = $region5
    $region4: #{tpu_custom_call.1} parent=1 // pred_region
      %s17 = ssub.s32 128, 128
      %18 = vsyncadd [#allocation3], %s17
      %s20 = sshll.u32 [#allocation2], 4
      %s21 = int_to_ptr.vmem [resolvable:$true] %s20
      %23 = dma.hbm_to_vmem [thread:$0]  %s0, 128, %s21, [#allocation3]
    $region5: #{tpu_custom_call.1} parent=1 // pred_fallthru
      _
    // Predicated region
    $region6: #{tpu_custom_call.1} parent=1 // pred_check
      _
    $region7: #{tpu_custom_call.1} parent=1 // pred_check_branch
      %25 = sbr.rel (0) target = $region9
    $region8: #{tpu_custom_call.1} parent=1 // pred_region
      %s27 = ssub.s32 512, 512
      %28 = vsyncadd [#allocation6], %s27
      %s29 = sshll.u32 [#allocation5], 4
      %s30 = int_to_ptr.vmem [resolvable:$true] %s29
      %35 = dma.hbm_to_vmem [thread:$0]  %s1, 512, %s30, [#allocation6], 128, 128, 8
    $region9: #{tpu_custom_call.1} parent=1 // pred_fallthru
      _
    // Predicated region
    $region10: #{tpu_custom_call.1} parent=1 // pred_check
      _
    $region11: #{tpu_custom_call.1} parent=1 // pred_check_branch
      %37 = sbr.rel (0) target = $region13
    $region12: #{tpu_custom_call.1} parent=1 // pred_region
      %s39 = ssub.s32 2048, 2048
      %40 = vsyncadd [#allocation6], %s39
      %s41 = sshll.u32 [#allocation7], 4
      %s42 = int_to_ptr.vmem [resolvable:$true] %s41
      %47 = dma.hbm_to_vmem [thread:$0]  %s2, 2048, %s42, [#allocation6], 128, 128, 8
    $region13: #{tpu_custom_call.1} parent=1 // pred_fallthru
      _
    // Predicated region
    $region14: #{tpu_custom_call.1} parent=1 // pred_check
      _
    $region15: #{tpu_custom_call.1} parent=1 // pred_check_branch
      %49 = sbr.rel (0) target = $region17
    $region16: #{tpu_custom_call.1} parent=1 // pred_region
      %s51 = ssub.s32 2048, 2048
      %52 = vsyncadd [#allocation9], %s51
      %s53 = sshll.u32 [#allocation8], 4
      %s54 = int_to_ptr.vmem [resolvable:$true] %s53
      %59 = dma.hbm_to_vmem [thread:$0]  %s3, 2048, %s54, [#allocation9], 128, 128, 8
    $region17: #{tpu_custom_call.1} parent=1 // pred_fallthru
      _
    // Predicated region
    $region18: #{tpu_custom_call.1} parent=1 // pred_check
      _
    $region19: #{tpu_custom_call.1} parent=1 // pred_check_branch
      %61 = sbr.rel (0) target = $region21
    $region20: #{tpu_custom_call.1} parent=1 // pred_region
      _
    $region21: #{tpu_custom_call.1} parent=1 // pred_fallthru
      _
    // Predicated region
    $region22: #{tpu_custom_call.1} parent=1 // pred_check
      _
    $region23: #{tpu_custom_call.1} parent=1 // pred_check_branch
      %63 = sbr.rel (0) target = $region25
    $region24: #{tpu_custom_call.1} parent=1 // pred_region
      %64 = dma.done [#allocation3], 128
    $region25: #{tpu_custom_call.1} parent=1 // pred_fallthru
      _
    // Predicated region
    $region26: #{tpu_custom_call.1} parent=1 // pred_check
      _
    $region27: #{tpu_custom_call.1} parent=1 // pred_check_branch
      %66 = sbr.rel (0) target = $region29
    $region28: #{tpu_custom_call.1} parent=1 // pred_region
      %67 = dma.done [#allocation6], 512
    $region29: #{tpu_custom_call.1} parent=1 // pred_fallthru
      _
    // Predicated region
    $region30: #{tpu_custom_call.1} parent=1 // pred_check
      _
    $region31: #{tpu_custom_call.1} parent=1 // pred_check_branch
      %69 = sbr.rel (0) target = $region33
    $region32: #{tpu_custom_call.1} parent=1 // pred_region
      %70 = dma.done [#allocation6], 2048
    $region33: #{tpu_custom_call.1} parent=1 // pred_fallthru
      _
    // Predicated region
    $region34: #{tpu_custom_call.1} parent=1 // pred_check
      _
    $region35: #{tpu_custom_call.1} parent=1 // pred_check_branch
      %72 = sbr.rel (0) target = $region37
    $region36: #{tpu_custom_call.1} parent=1 // pred_region
      %73 = dma.done [#allocation9], 2048
    $region37: #{tpu_custom_call.1} parent=1 // pred_fallthru
      _
    %v74 = vld [vmem:[#allocation2] sm:$0xff]
    %v75 = vld [vmem:[#allocation5] sm:$0xff]
    %v76 = vld [vmem:[#allocation5 + $0x8] sm:$0xff]
    %v77 = vld [vmem:[#allocation5 + $0x10] sm:$0xff]
    %v78 = vld [vmem:[#allocation5 + $0x18] sm:$0xff]
    %v79 = vld [vmem:[%s4] sm:$0x1]
    %v80 = vlaneseq
    %v81 = vshrl.u32 %v80, 7
    %v82 = vsub.s32 0, %v81
    %v83 = vrot.slane %v79, %v82
    %vm84 = vcmask 261120
    %v86 = vsel %vm84, %v74, 0
    %88 = vmatprep.subr.mxu0 0.0
    %89 = vmatpush1.msra.mxu0 %v75
    %90 = vmatprep.subr.mxu0 0.0
    %91 = vmatpush1.msra.mxu0 %v76
    %92 = vmatprep.subr.mxu0 0.0
    %93 = vmatpush1.msra.mxu0 %v77
    %94 = vmatprep.subr.mxu0 0.0
    %95 = vmatpush1.msra.mxu0 %v78
    %96 = vmatprep.subr.mxu0 0.0
    %97 = vmatpush1.msra.mxu0 0.0
    %98 = vmatprep.subr.mxu0 0.0
    %99 = vmatpush1.msra.mxu0 0.0
    %100 = vmatprep.subr.mxu0 0.0
    %101 = vmatpush1.msra.mxu0 0.0
    %102 = vmatprep.subr.mxu0 0.0
    %103 = vmatpush1.msra.mxu0 0.0
    %104 = vmatprep.subr.mxu0 0.0
    %105 = vmatpush1.msra.mxu0 0.0
    %106 = vmatprep.subr.mxu0 0.0
    %107 = vmatpush1.msra.mxu0 0.0
    %108 = vmatprep.subr.mxu0 0.0
    %109 = vmatpush1.msra.mxu0 0.0
    %110 = vmatprep.subr.mxu0 0.0
    %111 = vmatpush1.msra.mxu0 0.0
    %112 = vmatprep.subr.mxu0 0.0
    %113 = vmatpush1.msra.mxu0 0.0
    %114 = vmatprep.subr.mxu0 0.0
    %115 = vmatpush1.msra.mxu0 0.0
    %116 = vmatprep.subr.mxu0 0.0
    %117 = vmatpush1.msra.mxu0 0.0
    %118 = vmatprep.subr.mxu0 0.0
    %119 = vmatpush1.msra.mxu0 0.0
    %120 = vmatprep.subr.mxu0 0.0
    %121 = vmatpush1.msra.mxu0 0.0
    %122 = vmatprep.subr.mxu0 0.0
    %123 = vmatpush1.msra.mxu0 0.0
    %124 = vmatprep.subr.mxu0 0.0
    %125 = vmatpush1.msra.mxu0 0.0
    %126 = vmatprep.subr.mxu0 0.0
    %127 = vmatpush1.msra.mxu0 0.0
    %128 = vmatprep.subr.mxu0 0.0
    %129 = vmatpush1.msra.mxu0 0.0
    %130 = vmatprep.subr.mxu0 0.0
    %131 = vmatpush1.msra.mxu0 0.0
    %132 = vmatprep.subr.mxu0 0.0
    %133 = vmatpush1.msra.mxu0 0.0
    %134 = vmatprep.subr.mxu0 0.0
    %135 = vmatpush1.msra.mxu0 0.0
    %136 = vmatprep.subr.mxu0 0.0
    %137 = vmatpush1.msra.mxu0 0.0
    %138 = vmatprep.subr.mxu0 0.0
    %139 = vmatpush1.msra.mxu0 0.0
    %140 = vmatprep.subr.mxu0 0.0
    %141 = vmatpush1.msra.mxu0 0.0
    %142 = vmatprep.subr.mxu0 0.0
    %143 = vmatpush1.msra.mxu0 0.0
    %144 = vmatprep.subr.mxu0 0.0
    %145 = vmatpush1.msra.mxu0 0.0
    %146 = vmatprep.subr.mxu0 0.0
    %147 = vmatpush1.msra.mxu0 0.0
    %148 = vmatprep.subr.mxu0 0.0
    %149 = vmatpush1.msra.mxu0 0.0
    %150 = vmatprep.subr.mxu0 0.0
    %151 = vmatpush1.msra.mxu0 0.0
    %152 = vmatprep.mubr.f32.mxu0 0.0
    %153 = vmatmul.mubr.f32.gmra.mrb[0].mxu0 %v86
    %v154 = vpop.f32.mrb[0].mxu0
    %v155 = vadd.f32 %v83, %v154
    %v156 = vpop.f32.mrb[0].mxu0
    %157 = vdwg.mxu0
    %v158 = vmax.f32 %v155, 0.0
    %v159 = vld [vmem:[#allocation7] sm:$0xff]
    %v160 = vld [vmem:[#allocation7 + $0x8] sm:$0xff]
    %v161 = vld [vmem:[#allocation7 + $0x10] sm:$0xff]
    %v162 = vld [vmem:[#allocation7 + $0x18] sm:$0xff]
    %v163 = vld [vmem:[#allocation7 + $0x20] sm:$0xff]
    %v164 = vld [vmem:[#allocation7 + $0x28] sm:$0xff]
    %v165 = vld [vmem:[#allocation7 + $0x30] sm:$0xff]
    %v166 = vld [vmem:[#allocation7 + $0x38] sm:$0xff]
    %v167 = vld [vmem:[#allocation7 + $0x40] sm:$0xff]
    %v168 = vld [vmem:[#allocation7 + $0x48] sm:$0xff]
    %v169 = vld [vmem:[#allocation7 + $0x50] sm:$0xff]
    %v170 = vld [vmem:[#allocation7 + $0x58] sm:$0xff]
    %v171 = vld [vmem:[#allocation7 + $0x60] sm:$0xff]
    %v172 = vld [vmem:[#allocation7 + $0x68] sm:$0xff]
    %v173 = vld [vmem:[#allocation7 + $0x70] sm:$0xff]
    %v174 = vld [vmem:[#allocation7 + $0x78] sm:$0xff]
    %v175 = vld [vmem:[%s4 + $0x1] sm:$0x1]
    %v176 = vlaneseq
    %v177 = vshrl.u32 %v176, 7
    %v178 = vsub.s32 0, %v177
    %v179 = vrot.slane %v175, %v178
    %180 = vmatprep.subr.mxu0 0.0
    %181 = vmatpush1.msra.mxu0 %v159
    %182 = vmatprep.subr.mxu0 0.0
    %183 = vmatpush1.msra.mxu0 %v160
    %184 = vmatprep.subr.mxu0 0.0
    %185 = vmatpush1.msra.mxu0 %v161
    %186 = vmatprep.subr.mxu0 0.0
    %187 = vmatpush1.msra.mxu0 %v162
    %188 = vmatprep.subr.mxu0 0.0
    %189 = vmatpush1.msra.mxu0 %v163
    %190 = vmatprep.subr.mxu0 0.0
    %191 = vmatpush1.msra.mxu0 %v164
    %192 = vmatprep.subr.mxu0 0.0
    %193 = vmatpush1.msra.mxu0 %v165
    %194 = vmatprep.subr.mxu0 0.0
    %195 = vmatpush1.msra.mxu0 %v166
    %196 = vmatprep.subr.mxu0 0.0
    %197 = vmatpush1.msra.mxu0 %v167
    %198 = vmatprep.subr.mxu0 0.0
    %199 = vmatpush1.msra.mxu0 %v168
    %200 = vmatprep.subr.mxu0 0.0
    %201 = vmatpush1.msra.mxu0 %v169
    %202 = vmatprep.subr.mxu0 0.0
    %203 = vmatpush1.msra.mxu0 %v170
    %204 = vmatprep.subr.mxu0 0.0
    %205 = vmatpush1.msra.mxu0 %v171
    %206 = vmatprep.subr.mxu0 0.0
    %207 = vmatpush1.msra.mxu0 %v172
    %208 = vmatprep.subr.mxu0 0.0
    %209 = vmatpush1.msra.mxu0 %v173
    %210 = vmatprep.subr.mxu0 0.0
    %211 = vmatpush1.msra.mxu0 %v174
    %212 = vmatprep.subr.mxu0 0.0
    %213 = vmatpush1.msra.mxu0 0.0
    %214 = vmatprep.subr.mxu0 0.0
    %215 = vmatpush1.msra.mxu0 0.0
    %216 = vmatprep.subr.mxu0 0.0
    %217 = vmatpush1.msra.mxu0 0.0
    %218 = vmatprep.subr.mxu0 0.0
    %219 = vmatpush1.msra.mxu0 0.0
    %220 = vmatprep.subr.mxu0 0.0
    %221 = vmatpush1.msra.mxu0 0.0
    %222 = vmatprep.subr.mxu0 0.0
    %223 = vmatpush1.msra.mxu0 0.0
    %224 = vmatprep.subr.mxu0 0.0
    %225 = vmatpush1.msra.mxu0 0.0
    %226 = vmatprep.subr.mxu0 0.0
    %227 = vmatpush1.msra.mxu0 0.0
    %228 = vmatprep.subr.mxu0 0.0
    %229 = vmatpush1.msra.mxu0 0.0
    %230 = vmatprep.subr.mxu0 0.0
    %231 = vmatpush1.msra.mxu0 0.0
    %232 = vmatprep.subr.mxu0 0.0
    %233 = vmatpush1.msra.mxu0 0.0
    %234 = vmatprep.subr.mxu0 0.0
    %235 = vmatpush1.msra.mxu0 0.0
    %236 = vmatprep.subr.mxu0 0.0
    %237 = vmatpush1.msra.mxu0 0.0
    %238 = vmatprep.subr.mxu0 0.0
    %239 = vmatpush1.msra.mxu0 0.0
    %240 = vmatprep.subr.mxu0 0.0
    %241 = vmatpush1.msra.mxu0 0.0
    %242 = vmatprep.subr.mxu0 0.0
    %243 = vmatpush1.msra.mxu0 0.0
    %244 = vmatprep.mubr.f32.mxu0 0.0
    %245 = vmatmul.mubr.f32.gmra.mrb[0].mxu0 %v158
    %v246 = vpop.f32.mrb[0].mxu0
    %v247 = vadd.f32 %v179, %v246
    %v248 = vpop.f32.mrb[0].mxu0
    %249 = vdwg.mxu0
    %v250 = vmax.f32 %v247, 0.0
    %v251 = vld [vmem:[#allocation8] sm:$0xff]
    %v252 = vld [vmem:[#allocation8 + $0x8] sm:$0xff]
    %v253 = vld [vmem:[#allocation8 + $0x10] sm:$0xff]
    %v254 = vld [vmem:[#allocation8 + $0x18] sm:$0xff]
    %v255 = vld [vmem:[#allocation8 + $0x20] sm:$0xff]
    %v256 = vld [vmem:[#allocation8 + $0x28] sm:$0xff]
    %v257 = vld [vmem:[#allocation8 + $0x30] sm:$0xff]
    %v258 = vld [vmem:[#allocation8 + $0x38] sm:$0xff]
    %v259 = vld [vmem:[#allocation8 + $0x40] sm:$0xff]
    %v260 = vld [vmem:[#allocation8 + $0x48] sm:$0xff]
    %v261 = vld [vmem:[#allocation8 + $0x50] sm:$0xff]
    %v262 = vld [vmem:[#allocation8 + $0x58] sm:$0xff]
    %v263 = vld [vmem:[#allocation8 + $0x60] sm:$0xff]
    %v264 = vld [vmem:[#allocation8 + $0x68] sm:$0xff]
    %v265 = vld [vmem:[#allocation8 + $0x70] sm:$0xff]
    %v266 = vld [vmem:[#allocation8 + $0x78] sm:$0xff]
    %v267 = vld [vmem:[%s4 + $0x2] sm:$0x1]
    %v268 = vlaneseq
    %v269 = vshrl.u32 %v268, 7
    %v270 = vsub.s32 0, %v269
    %v271 = vrot.slane %v267, %v270
    %272 = vmatprep.subr.mxu0 0.0
    %273 = vmatpush1.msra.mxu0 %v251
    %274 = vmatprep.subr.mxu0 0.0
    %275 = vmatpush1.msra.mxu0 %v252
    %276 = vmatprep.subr.mxu0 0.0
    %277 = vmatpush1.msra.mxu0 %v253
    %278 = vmatprep.subr.mxu0 0.0
    %279 = vmatpush1.msra.mxu0 %v254
    %280 = vmatprep.subr.mxu0 0.0
    %281 = vmatpush1.msra.mxu0 %v255
    %282 = vmatprep.subr.mxu0 0.0
    %283 = vmatpush1.msra.mxu0 %v256
    %284 = vmatprep.subr.mxu0 0.0
    %285 = vmatpush1.msra.mxu0 %v257
    %286 = vmatprep.subr.mxu0 0.0
    %287 = vmatpush1.msra.mxu0 %v258
    %288 = vmatprep.subr.mxu0 0.0
    %289 = vmatpush1.msra.mxu0 %v259
    %290 = vmatprep.subr.mxu0 0.0
    %291 = vmatpush1.msra.mxu0 %v260
    %292 = vmatprep.subr.mxu0 0.0
    %293 = vmatpush1.msra.mxu0 %v261
    %294 = vmatprep.subr.mxu0 0.0
    %295 = vmatpush1.msra.mxu0 %v262
    %296 = vmatprep.subr.mxu0 0.0
    %297 = vmatpush1.msra.mxu0 %v263
    %298 = vmatprep.subr.mxu0 0.0
    %299 = vmatpush1.msra.mxu0 %v264
    %300 = vmatprep.subr.mxu0 0.0
    %301 = vmatpush1.msra.mxu0 %v265
    %302 = vmatprep.subr.mxu0 0.0
    %303 = vmatpush1.msra.mxu0 %v266
    %304 = vmatprep.subr.mxu0 0.0
    %305 = vmatpush1.msra.mxu0 0.0
    %306 = vmatprep.subr.mxu0 0.0
    %307 = vmatpush1.msra.mxu0 0.0
    %308 = vmatprep.subr.mxu0 0.0
    %309 = vmatpush1.msra.mxu0 0.0
    %310 = vmatprep.subr.mxu0 0.0
    %311 = vmatpush1.msra.mxu0 0.0
    %312 = vmatprep.subr.mxu0 0.0
    %313 = vmatpush1.msra.mxu0 0.0
    %314 = vmatprep.subr.mxu0 0.0
    %315 = vmatpush1.msra.mxu0 0.0
    %316 = vmatprep.subr.mxu0 0.0
    %317 = vmatpush1.msra.mxu0 0.0
    %318 = vmatprep.subr.mxu0 0.0
    %319 = vmatpush1.msra.mxu0 0.0
    %320 = vmatprep.subr.mxu0 0.0
    %321 = vmatpush1.msra.mxu0 0.0
    %322 = vmatprep.subr.mxu0 0.0
    %323 = vmatpush1.msra.mxu0 0.0
    %324 = vmatprep.subr.mxu0 0.0
    %325 = vmatpush1.msra.mxu0 0.0
    %326 = vmatprep.subr.mxu0 0.0
    %327 = vmatpush1.msra.mxu0 0.0
    %328 = vmatprep.subr.mxu0 0.0
    %329 = vmatpush1.msra.mxu0 0.0
    %330 = vmatprep.subr.mxu0 0.0
    %331 = vmatpush1.msra.mxu0 0.0
    %332 = vmatprep.subr.mxu0 0.0
    %333 = vmatpush1.msra.mxu0 0.0
    %334 = vmatprep.subr.mxu0 0.0
    %335 = vmatpush1.msra.mxu0 0.0
    %336 = vmatprep.mubr.f32.mxu0 0.0
    %337 = vmatmul.mubr.f32.gmra.mrb[0].mxu0 %v250
    %v338 = vpop.f32.mrb[0].mxu0
    %v339 = vadd.f32 %v271, %v338
    %v340 = vpop.f32.mrb[0].mxu0
    %341 = vdwg.mxu0
    %v342 = vlaneseq
    %v343 = vand.u32 %v342, 127
    %vm344 = vcmp.lt.s32.totalorder %v343, 4
    %v345 = vsel %vm344, %v339, -1e+30
    %346 = vmax.xlane.f32.xlu0 %v345
    %v347 = vpop.xlane.xlu0 %346
    %v348 = vsub.f32 %v345, %v347
    %v349 = vmul.f32 %v348, 1.442695
    %v350 = vpow.pop %v349
    %v351 = vsel %vm344, %v350, 0.0
    %352 = vadd.xlane.f32.xlu0 %v351
    %v353 = vpop.xlane.xlu0 %352
    %v354 = vrcp.pop %v353
    %v355 = vmul.f32 %v351, %v354
    %vm356 = vcmp.eq.s32.totalorder %v343, 4
    %v357 = vsel %vm356, %v339, 0.0
    %v358 = vsel %vm344, %v355, %v357
    %359 = vst [vmem:[#allocation10] sm:$0xff] %v358
    // Predicated region
    $region38: #{tpu_custom_call.1} parent=1 // pred_check
      _
    $region39: #{tpu_custom_call.1} parent=1 // pred_check_branch
      %361 = sbr.rel (0) target = $region41
    $region40: #{tpu_custom_call.1} parent=1 // pred_region
      %s363 = ssub.s32 128, 128
      %364 = vsyncadd [#allocation4], %s363
      %s366 = sshll.u32 [#allocation10], 4
      %s367 = int_to_ptr.vmem [resolvable:$true] %s366
      %369 = dma.vmem_to_hbm [thread:$0]  %s367, 128, %s5, [#allocation4]
    $region41: #{tpu_custom_call.1} parent=1 // pred_fallthru
      _
    // Predicated region
    $region42: #{tpu_custom_call.1} parent=1 // pred_check
      _
    $region43: #{tpu_custom_call.1} parent=1 // pred_check_branch
      %371 = sbr.rel (0) target = $region45
    $region44: #{tpu_custom_call.1} parent=1 // pred_region
      %372 = dma.done [#allocation4], 128
    $region45: #{tpu_custom_call.1} parent=1 // pred_fallthru
      _
    %373 = vsyncpa [#allocation3], 1
    %374 = vsyncpa [#allocation6], 1
    %375 = vsyncpa [#allocation9], 1
    %376 = vsyncpa [#allocation4], 1

</llo_original>
